<compile_context>
chip_gen: v5e
topology: v5e:2x2
jax: 0.10.0
libtpu: 0.0.40
codegen_flags: <defaults>
</compile_context>

<pallas_src>
import jax
import jax.numpy as jnp
from jax.experimental import pallas as pl
from jax.experimental.pallas import tpu as pltpu


D_IN = 784    # input features
O_TRUE = 10   # true output features (nn.Linear(784, 10))
O_PAD = 128   # lane-dense padded output width


def linear_kernel(x_ref, w_ref, b_ref, o_ref):
    # x_ref: [TB, 784]    batch tile, features on lanes
    # w_ref: [784, 128]   pre-transposed weight: K on sublanes, N on lanes
    # b_ref: [1, 128]
    # o_ref: [TB, 128]    lane-dense output block
    y = jnp.dot(x_ref[...], w_ref[...], preferred_element_type=jnp.float32)
    o_ref[...] = y + b_ref[...]


def prepare_mnist_logistic_params(weight, bias):
    """One-time (hoisted) pad + transpose of PyTorch-layout params.

    weight: [10, 784] (PyTorch nn.Linear layout), bias: [10]
    Returns w_pad_t: [784, 128], b_pad: [1, 128], both float32.
    """
    O, D = weight.shape
    w_pad_t = (
        jnp.zeros((D, O_PAD), dtype=jnp.float32)
        .at[:, :O]
        .set(jnp.asarray(weight, jnp.float32).T)
    )
    b_pad = (
        jnp.zeros((1, O_PAD), dtype=jnp.float32)
        .at[0, :O]
        .set(jnp.asarray(bias, jnp.float32))
    )
    return w_pad_t, b_pad


def _choose_tb(B, tb):
    """Pick a batch tile size: >= 2 tiles when possible (v7x dual-TC), 8-aligned."""
    if B <= 8:
        return B  # single full-extent block
    if B <= 2 * tb:
        half = -(-B // 2)                 # cdiv(B, 2)
        return max(8, ((half + 7) // 8) * 8)
    return tb


def _resident_spec(block_shape, index_map):
    """Constant-index-map block: request single buffering (no dead 2nd copy)."""
    try:
        return pl.BlockSpec(block_shape, index_map, pipeline_mode=pl.Buffered(1))
    except TypeError:
        # Older JAX without pipeline_mode kwarg: fall back to default buffering.
        return pl.BlockSpec(block_shape, index_map)


def mnist_logistic_forward(x, w_pad_t, b_pad, *, tb=2048, out_features=O_TRUE,
                           return_padded=False):
    """x: [B, 784] f32. w_pad_t/b_pad from prepare_mnist_logistic_params()."""
    B, D = x.shape
    TB = _choose_tb(B, tb)
    grid = (pl.cdiv(B, TB),)

    out_padded = pl.pallas_call(
        linear_kernel,
        out_shape=jax.ShapeDtypeStruct((B, O_PAD), jnp.float32),
        grid=grid,
        in_specs=[
            # x: tiled over batch; double-buffered by the Pallas pipeline.
            pl.BlockSpec((TB, D), lambda i: (i, 0)),
            # weight / bias: constant index_map -> resident in VMEM, single-buffered.
            _resident_spec((D, O_PAD), lambda i: (0, 0)),
            _resident_spec((1, O_PAD), lambda i: (0, 0)),
        ],
        out_specs=pl.BlockSpec((TB, O_PAD), lambda i: (i, 0)),
        compiler_params=pltpu.CompilerParams(
            # Batch tiles are independent -> shard across TCs on v7x.
            dimension_semantics=("parallel",),
            # TB=2048: ~13 MB double-buffered x + ~2 MB out + 0.4 MB weight.
            vmem_limit_bytes=48 * 1024 * 1024,
        ),
    )(x, w_pad_t, b_pad)

    if return_padded:
        # Let the consumer (loss / softmax over 10 classes) slice or mask the
        # padded columns inside its own fusion — avoids an extra HBM round-trip.
        return out_padded
    return out_padded[:, :out_features]


if __name__ == "__main__":
    key = jax.random.PRNGKey(0)
    k_x, k_w, k_b = jax.random.split(key, 3)

    B, D, O = 64, 784, 10  # bs=64 as in the original script; Linear(784, 10)

    x = jax.random.normal(k_x, (B, D), dtype=jnp.float32)
    # Deterministic init mimicking nn.Linear's uniform(-1/sqrt(D), 1/sqrt(D))
    bound = 1.0 / (D ** 0.5)
    weight = jax.random.uniform(k_w, (O, D), minval=-bound, maxval=bound,
                                dtype=jnp.float32)
    bias = jax.random.uniform(k_b, (O,), minval=-bound, maxval=bound,
                              dtype=jnp.float32)

    # Parameter padding / transpose done once, outside the forward hot path.
    w_pad_t, b_pad = prepare_mnist_logistic_params(weight, bias)

    out = mnist_logistic_forward(x, w_pad_t, b_pad)
    out = jax.block_until_ready(out)

    # sanity check against plain-JAX reference
    ref = x @ weight.T + bias
    assert out.shape == (B, O)
    assert jnp.allclose(out, ref, atol=1e-4, rtol=1e-4)

    print("KERNEL_OK")
</pallas_src>

<mosaic_0001>
module attributes {stable_mosaic.version = 11 : i64} {
  func.func @linear_kernel(%arg0: i32, %arg1: memref<32x784xf32, #tpu.memory_space<vmem>>, %arg2: memref<784x128xf32, #tpu.memory_space<vmem>>, %arg3: memref<1x128xf32, #tpu.memory_space<vmem>>, %arg4: memref<32x128xf32, #tpu.memory_space<vmem>>) attributes {dimension_semantics = [#tpu.dimension_semantics<parallel>], iteration_bounds = array<i64: 2>, scalar_prefetch = 0 : i64, scratch_operands = 0 : i64, tpu.core_type = #tpu.core_type<tc>, window_params = [{transform_indices = @transform_0, window_bounds = array<i64: 32, 784>}, {pipeline_mode = #tpu.pipeline_mode<synchronous>, transform_indices = @transform_1, window_bounds = array<i64: 784, 128>}, {pipeline_mode = #tpu.pipeline_mode<synchronous>, transform_indices = @transform_2, window_bounds = array<i64: 1, 128>}, {transform_indices = @transform_3, window_bounds = array<i64: 32, 128>}]} {
    %c0 = arith.constant 0 : index
    %c0_0 = arith.constant 0 : index
    %0 = vector.load %arg1[%c0, %c0_0] : memref<32x784xf32, #tpu.memory_space<vmem>>, vector<32x784xf32>
    %c0_1 = arith.constant 0 : index
    %c0_2 = arith.constant 0 : index
    %1 = vector.load %arg2[%c0_1, %c0_2] : memref<784x128xf32, #tpu.memory_space<vmem>>, vector<784x128xf32>
    %cst = arith.constant dense<0.000000e+00> : vector<32x128xf32>
    %2 = tpu.matmul %0, %1, %cst {dimension_numbers = #tpu.dot_dimension_numbers<[1], [0], [0], [1], [0, 0, 1, 1], [], []>} : vector<32x784xf32>, vector<784x128xf32>, vector<32x128xf32> -> vector<32x128xf32>
    %c0_3 = arith.constant 0 : index
    %c0_4 = arith.constant 0 : index
    %3 = vector.load %arg3[%c0_3, %c0_4] : memref<1x128xf32, #tpu.memory_space<vmem>>, vector<1x128xf32>
    %4 = vector.broadcast %3 : vector<1x128xf32> to vector<32x128xf32>
    %5 = arith.addf %2, %4 : vector<32x128xf32>
    %c0_5 = arith.constant 0 : index
    %c0_6 = arith.constant 0 : index
    %6 = vector.load %arg4[%c0_5, %c0_6] : memref<32x128xf32, #tpu.memory_space<vmem>>, vector<32x128xf32>
    tpu.vector_store %arg4[%c0_5, %c0_6], %5 {strides = array<i32>} : memref<32x128xf32, #tpu.memory_space<vmem>>, vector<32x128xf32>,
    return
  }
  func.func @transform_0(%arg0: i32) -> (i32, i32) {
    %c0_i32 = arith.constant 0 : i32
    %c0_i32_0 = arith.constant 0 : i32
    return %arg0, %c0_i32 : i32, i32
  }
  func.func @transform_1(%arg0: i32) -> (i32, i32) {
    %c0_i32 = arith.constant 0 : i32
    %c0_i32_0 = arith.constant 0 : i32
    %c0_i32_1 = arith.constant 0 : i32
    return %c0_i32, %c0_i32_0 : i32, i32
  }
  func.func @transform_2(%arg0: i32) -> (i32, i32) {
    %c0_i32 = arith.constant 0 : i32
    %c0_i32_0 = arith.constant 0 : i32
    %c0_i32_1 = arith.constant 0 : i32
    return %c0_i32, %c0_i32_0 : i32, i32
  }
  func.func @transform_3(%arg0: i32) -> (i32, i32) {
    %c0_i32 = arith.constant 0 : i32
    %c0_i32_0 = arith.constant 0 : i32
    return %arg0, %c0_i32 : i32, i32
  }
}

</mosaic_0001>

<llo_original>
// kernel: tpu_custom_call.1
$region0: #{tpu_custom_call.1}
  #allocation0 [shape = 'u32[]', space=smem, size = 0x4, offset = 0x4, fixed_abs, tag = 'smem constant byte address 0x4 - core index']
  #allocation1 [shape = 'u32[72,128]{1,0:T(1,128)}', space=vmem, size = 0x9000, scoped, tag = 'internal scratch']
  %s0 = inlined_call_operand.hbm [shape: f32[64,784], index: 0, kind: input, shape index: {}]
  %s1 = inlined_call_operand.hbm [shape: f32[784,128], index: 1, kind: input, shape index: {}]
  %s2 = inlined_call_operand.vmem [shape: f32[1,128], index: 2, kind: input, shape index: {}]
  %s3 = inlined_call_operand.hbm [shape: f32[64,128], index: 3, kind: output, shape index: {}]
  %s4 = sld [smem:[#allocation0]]
  $region53: #{tpu_custom_call.1} parent=0
    _
  %s6 = ssub.s32 1, %s4
  %s7 = scalar_select 0, %s6, %s4
  $region1: #{tpu_custom_call.1} parent=0
    #allocation2 [shape = 'u8[229376]{0}', space=vmem, size = 0x38000, scoped, tag = 'input window, operand 0']
    #allocation3 [shape = 's32[2]{0}', space=sflag, size = 0x8, scoped, tag = 'scoped memory for tpu_custom_call.1']
    #allocation4 [shape = 's32[2]{0}', space=sflag, size = 0x8, scoped, tag = 'scoped memory for tpu_custom_call.1']
    #allocation5 [shape = 'u8[401408]{0}', space=vmem, size = 0x62000, scoped, tag = 'input window, operand 1, single buffered']
    #allocation6 [shape = 's32[1]{0}', space=sflag, size = 0x4, scoped, tag = 'scoped memory for tpu_custom_call.1']
    #allocation7 [shape = 'u8[32768]{0}', space=vmem, size = 0x8000, scoped, tag = 'output window, operand 0']
    %8 = vsyncpa [#allocation3], 0
    %s9 = scalar_lea.sflag [#allocation3], 1
    %10 = vsyncpa %s9, 0
    %11 = vsyncpa [#allocation6], 0
    %12 = vsyncpa [#allocation4], 0
    %s13 = scalar_lea.sflag [#allocation4], 1
    %14 = vsyncpa %s13, 0
    loop: start=0, step=1, limit=4
    $region2: #{tpu_custom_call.1} parent=1 // loop_pre_header
      _
    $region3: #{tpu_custom_call.1} parent=1 // loop_header
      %s16 = sphi 0, %s20
      %p17 = scmp.ge.s32.totalorder %s16, 4
      %s26 = sphi 0, %s28
      %s29 = sphi 0, %s26
      %s30 = sphi 0, %s29
      %s46 = sphi 0, %s30
      %s50 = sphi 0, %s50
      %s52 = sphi 0, %s50
      %s53 = sphi 0, %s52
      %s67 = sphi 0, %s53
      %s71 = sphi 0, %s71
      %s73 = sphi 0, %s71
      %s74 = sphi 0, %s73
      %s88 = sphi 0, %s74
      %s94 = sphi 0, %s96
      %s97 = sphi 0, %s94
      %s98 = sphi 0, %s97
      %s114 = sphi 0, %s98
    $region4: #{tpu_custom_call.1} parent=1 // loop_header_branch
      %19 = sbr.rel (%p17) target = $region8
    $region5: #{tpu_custom_call.1} parent=1 // loop_body
      %s21 = ssub.s32 %s16, 1
      %s22 = ssub.s32 %s16, 2
      %s23 = sadd.s32 %s16, 1
      %s24 = ssub.s32 %s16, %s23
      %p25 = scmp.eq.s32.totalorder %s24, 0
      %s27 = sadd.s32 %s26, 1
      %s28 = scalar_select %p25, %s26, %s27
      %p31 = pneg %p25
      %p32 = scmp.eq.s32.totalorder %s16, 1
      %p33 = por %p31, %p32
      %p34 = scmp.ne.s32.totalorder %s26, %s29
      %p35 = scmp.eq.s32.totalorder %s16, 0
      %p36 = por %p34, %p35
      %p37 = scmp.ne.s32.totalorder %s26, %s29
      %p38 = scmp.eq.s32.totalorder %s21, 1
      %p39 = por %p37, %p38
      %p40 = scmp.ne.s32.totalorder %s29, %s30
      %p41 = scmp.eq.s32.totalorder %s21, 0
      %p42 = por %p40, %p41
      %p43 = scmp.ne.s32.totalorder %s29, %s30
      %p44 = scmp.eq.s32.totalorder %s22, 1
      %p45 = por %p43, %p44
      %p47 = scmp.ne.s32.totalorder %s30, %s46
      %p48 = scmp.eq.s32.totalorder %s22, 0
      %p49 = por %p47, %p48
      %s51 = sadd.s32 %s50, 1
      %p54 = scmp.eq.s32.totalorder %s16, 1
      %p55 = scmp.ne.s32.totalorder %s50, %s52
      %p56 = scmp.eq.s32.totalorder %s16, 0
      %p57 = por %p55, %p56
      %p58 = scmp.ne.s32.totalorder %s50, %s52
      %p59 = scmp.eq.s32.totalorder %s21, 1
      %p60 = por %p58, %p59
      %p61 = scmp.ne.s32.totalorder %s52, %s53
      %p62 = scmp.eq.s32.totalorder %s21, 0
      %p63 = por %p61, %p62
      %p64 = scmp.ne.s32.totalorder %s52, %s53
      %p65 = scmp.eq.s32.totalorder %s22, 1
      %p66 = por %p64, %p65
      %p68 = scmp.ne.s32.totalorder %s53, %s67
      %p69 = scmp.eq.s32.totalorder %s22, 0
      %p70 = por %p68, %p69
      %s72 = sadd.s32 %s71, 1
      %p75 = scmp.eq.s32.totalorder %s16, 1
      %p76 = scmp.ne.s32.totalorder %s71, %s73
      %p77 = scmp.eq.s32.totalorder %s16, 0
      %p78 = por %p76, %p77
      %p79 = scmp.ne.s32.totalorder %s71, %s73
      %p80 = scmp.eq.s32.totalorder %s21, 1
      %p81 = por %p79, %p80
      %p82 = scmp.ne.s32.totalorder %s73, %s74
      %p83 = scmp.eq.s32.totalorder %s21, 0
      %p84 = por %p82, %p83
      %p85 = scmp.ne.s32.totalorder %s73, %s74
      %p86 = scmp.eq.s32.totalorder %s22, 1
      %p87 = por %p85, %p86
      %p89 = scmp.ne.s32.totalorder %s74, %s88
      %p90 = scmp.eq.s32.totalorder %s22, 0
      %p91 = por %p89, %p90
      %s92 = ssub.s32 %s16, %s23
      %p93 = scmp.eq.s32.totalorder %s92, 0
      %s95 = sadd.s32 %s94, 1
      %s96 = scalar_select %p93, %s94, %s95
      %p99 = pneg %p93
      %p100 = scmp.eq.s32.totalorder %s16, 1
      %p101 = por %p99, %p100
      %p102 = scmp.ne.s32.totalorder %s94, %s97
      %p103 = scmp.eq.s32.totalorder %s16, 0
      %p104 = por %p102, %p103
      %p105 = scmp.ne.s32.totalorder %s94, %s97
      %p106 = scmp.eq.s32.totalorder %s21, 1
      %p107 = por %p105, %p106
      %p108 = scmp.ne.s32.totalorder %s97, %s98
      %p109 = scmp.eq.s32.totalorder %s21, 0
      %p110 = por %p108, %p109
      %p111 = scmp.ne.s32.totalorder %s97, %s98
      %p112 = scmp.eq.s32.totalorder %s22, 1
      %p113 = por %p111, %p112
      %p115 = scmp.ne.s32.totalorder %s98, %s114
      %p116 = scmp.eq.s32.totalorder %s22, 0
      %p117 = por %p115, %p116
      %p118 = scmp.le.s32.totalorder 1, %s16
      %p119 = scmp.lt.s32.totalorder %s16, 3
      %p120 = pnand %p118, %p119
      %p121 = pneg %p120
      // Predicated region
      $region9: #{tpu_custom_call.1} parent=5 // pred_check
        _
      $region10: #{tpu_custom_call.1} parent=5 // pred_check_branch
        %123 = sbr.rel (%p120) target = $region12
      $region11: #{tpu_custom_call.1} parent=5 // pred_region
        %s124 = ssub.s32 %s16, 1
        // Predicated region
        $region13: #{tpu_custom_call.1} parent=11 // pred_check
          %p125 = pneg %p63
        $region14: #{tpu_custom_call.1} parent=11 // pred_check_branch
          %127 = sbr.rel (%p125) target = $region16
        $region15: #{tpu_custom_call.1} parent=11 // pred_region
          %129 = vsyncadd [#allocation6], 0
          %s130 = sshll.u32 %s1, 4
          %s131 = int_to_ptr.hbm [resolvable:$true] %s130
          %s132 = sshll.u32 [#allocation5], 4
          %s133 = int_to_ptr.vmem [resolvable:$true] %s132
          %138 = dma.hbm_to_vmem [thread:$0]  %s131, 12544, %s133, [#allocation6], 128, 128, 8
        $region16: #{tpu_custom_call.1} parent=11 // pred_fallthru
          _
        // Predicated region
        $region17: #{tpu_custom_call.1} parent=11 // pred_check
          %p139 = pneg %p84
        $region18: #{tpu_custom_call.1} parent=11 // pred_check_branch
          %141 = sbr.rel (%p139) target = $region20
        $region19: #{tpu_custom_call.1} parent=11 // pred_region
          _
        $region20: #{tpu_custom_call.1} parent=11 // pred_fallthru
          _
      $region12: #{tpu_custom_call.1} parent=5 // pred_fallthru
        _
      %p142 = scmp.lt.s32.totalorder %s16, 2
      // Predicated region
      $region21: #{tpu_custom_call.1} parent=5 // pred_check
        %p143 = pneg %p142
      $region22: #{tpu_custom_call.1} parent=5 // pred_check_branch
        %145 = sbr.rel (%p143) target = $region24
      $region23: #{tpu_custom_call.1} parent=5 // pred_region
        // Predicated region
        $region25: #{tpu_custom_call.1} parent=23 // pred_check
          %p146 = pneg %p36
        $region26: #{tpu_custom_call.1} parent=23 // pred_check_branch
          %148 = sbr.rel (%p146) target = $region28
        $region27: #{tpu_custom_call.1} parent=23 // pred_region
          %s149 = sand.u32 %s26, 1
          %s150 = scalar_lea.sflag [#allocation3], %s149
          %s151 = sand.u32 %s26, 1
          %s152 = smul.addr %s151, 224
          %s153 = scalar_lea.vmem [#allocation2], %s152
          %s154 = smul.u32 4, %s16
          %156 = vsyncadd %s150, 0
          %s157 = smul.addr %s154, 7
          %s158 = smul.addr %s157, 8
          %s159 = scalar_lea.hbm %s0, %s158
          %s160 = sshll.u32 %s159, 4
          %s161 = int_to_ptr.hbm [resolvable:$true] %s160
          %s162 = sshll.u32 %s153, 4
          %s163 = int_to_ptr.vmem [resolvable:$true] %s162
          %168 = dma.hbm_to_vmem [thread:$0]  %s161, 3584, %s163, %s150, 896, 896, 56
        $region28: #{tpu_custom_call.1} parent=23 // pred_fallthru
          _
      $region24: #{tpu_custom_call.1} parent=5 // pred_fallthru
        _
      %p169 = scmp.le.s32.totalorder 1, %s16
      %p170 = scmp.lt.s32.totalorder %s16, 3
      %p171 = pnand %p169, %p170
      %p172 = pneg %p171
      // Predicated region
      $region29: #{tpu_custom_call.1} parent=5 // pred_check
        _
      $region30: #{tpu_custom_call.1} parent=5 // pred_check_branch
        %174 = sbr.rel (%p171) target = $region32
      $region31: #{tpu_custom_call.1} parent=5 // pred_region
        %s175 = ssub.s32 %s16, 1
        %s176 = sand.u32 %s29, 1
        %s177 = scalar_lea.sflag [#allocation3], %s176
        %s178 = sand.u32 %s29, 1
        %s179 = smul.addr %s178, 224
        %s180 = scalar_lea.vmem [#allocation2], %s179
        // Predicated region
        $region33: #{tpu_custom_call.1} parent=31 // pred_check
          %p181 = pneg %p42
        $region34: #{tpu_custom_call.1} parent=31 // pred_check_branch
          %183 = sbr.rel (%p181) target = $region36
        $region35: #{tpu_custom_call.1} parent=31 // pred_region
          %185 = dma.done %s177, 3584
        $region36: #{tpu_custom_call.1} parent=31 // pred_fallthru
          _
        // Predicated region
        $region37: #{tpu_custom_call.1} parent=31 // pred_check
          %p186 = pneg %p63
        $region38: #{tpu_custom_call.1} parent=31 // pred_check_branch
          %188 = sbr.rel (%p186) target = $region40
        $region39: #{tpu_custom_call.1} parent=31 // pred_region
          %190 = dma.done [#allocation6], 12544
        $region40: #{tpu_custom_call.1} parent=31 // pred_fallthru
          _
        %s191 = sand.u32 %s29, 1
        %s192 = scalar_lea.sflag [#allocation3], %s191
        %s193 = sand.u32 %s29, 1
        %s194 = smul.addr %s193, 224
        %s195 = scalar_lea.vmem [#allocation2], %s194
        %p196 = pneg %p42
        %p197 = pneg %p39
        %p198 = pneg %p63
        %p199 = pneg %p60
        %p200 = pneg %p84
        %p201 = pneg %p81
        %p202 = pneg %p110
        %p203 = pneg %p107
        %s204 = sand.u32 %s97, 1
        %s205 = scalar_lea.sflag [#allocation4], %s204
        %s206 = sand.u32 %s97, 1
        %s207 = smul.addr %s206, 32
        %s208 = scalar_lea.vmem [#allocation7], %s207
        %s209 = smul.u32 4, %s21
        %s210 = smul.u32 4, %s21
        %v211 = vld [vmem:[%s180] sm:$0xff]
        %v212 = vld [vmem:[%s180 + $0x8] sm:$0xff]
        %v213 = vld [vmem:[%s180 + $0x10] sm:$0xff]
        %v214 = vld [vmem:[%s180 + $0x18] sm:$0xff]
        %v215 = vld [vmem:[%s180 + $0x20] sm:$0xff]
        %v216 = vld [vmem:[%s180 + $0x28] sm:$0xff]
        %v217 = vld [vmem:[%s180 + $0x30] sm:$0xff]
        %v218 = vld [vmem:[%s180 + $0x38] sm:$0xff]
        %v219 = vld [vmem:[%s180 + $0x40] sm:$0xff]
        %v220 = vld [vmem:[%s180 + $0x48] sm:$0xff]
        %v221 = vld [vmem:[%s180 + $0x50] sm:$0xff]
        %v222 = vld [vmem:[%s180 + $0x58] sm:$0xff]
        %v223 = vld [vmem:[%s180 + $0x60] sm:$0xff]
        %v224 = vld [vmem:[%s180 + $0x68] sm:$0xff]
        %v225 = vld [vmem:[%s180 + $0x70] sm:$0xff]
        %v226 = vld [vmem:[%s180 + $0x78] sm:$0xff]
        %v227 = vld [vmem:[%s180 + $0x80] sm:$0xff]
        %v228 = vld [vmem:[%s180 + $0x88] sm:$0xff]
        %v229 = vld [vmem:[%s180 + $0x90] sm:$0xff]
        %v230 = vld [vmem:[%s180 + $0x98] sm:$0xff]
        %v231 = vld [vmem:[%s180 + $0xa0] sm:$0xff]
        %v232 = vld [vmem:[%s180 + $0xa8] sm:$0xff]
        %v233 = vld [vmem:[%s180 + $0xb0] sm:$0xff]
        %v234 = vld [vmem:[%s180 + $0xb8] sm:$0xff]
        %v235 = vld [vmem:[%s180 + $0xc0] sm:$0xff]
        %v236 = vld [vmem:[%s180 + $0xc8] sm:$0xff]
        %v237 = vld [vmem:[%s180 + $0xd0] sm:$0xff]
        %v238 = vld [vmem:[%s180 + $0xd8] sm:$0xff]
        %v239 = vld [vmem:[#allocation5] sm:$0xff]
        %v240 = vld [vmem:[#allocation5 + $0x8] sm:$0xff]
        %v241 = vld [vmem:[#allocation5 + $0x10] sm:$0xff]
        %v242 = vld [vmem:[#allocation5 + $0x18] sm:$0xff]
        %v243 = vld [vmem:[#allocation5 + $0x20] sm:$0xff]
        %v244 = vld [vmem:[#allocation5 + $0x28] sm:$0xff]
        %v245 = vld [vmem:[#allocation5 + $0x30] sm:$0xff]
        %v246 = vld [vmem:[#allocation5 + $0x38] sm:$0xff]
        %v247 = vld [vmem:[#allocation5 + $0x40] sm:$0xff]
        %v248 = vld [vmem:[#allocation5 + $0x48] sm:$0xff]
        %v249 = vld [vmem:[#allocation5 + $0x50] sm:$0xff]
        %v250 = vld [vmem:[#allocation5 + $0x58] sm:$0xff]
        %v251 = vld [vmem:[#allocation5 + $0x60] sm:$0xff]
        %v252 = vld [vmem:[#allocation5 + $0x68] sm:$0xff]
        %v253 = vld [vmem:[#allocation5 + $0x70] sm:$0xff]
        %v254 = vld [vmem:[#allocation5 + $0x78] sm:$0xff]
        %v255 = vld [vmem:[#allocation5 + $0x80] sm:$0xff]
        %v256 = vld [vmem:[#allocation5 + $0x88] sm:$0xff]
        %v257 = vld [vmem:[#allocation5 + $0x90] sm:$0xff]
        %v258 = vld [vmem:[#allocation5 + $0x98] sm:$0xff]
        %v259 = vld [vmem:[#allocation5 + $0xa0] sm:$0xff]
        %v260 = vld [vmem:[#allocation5 + $0xa8] sm:$0xff]
        %v261 = vld [vmem:[#allocation5 + $0xb0] sm:$0xff]
        %v262 = vld [vmem:[#allocation5 + $0xb8] sm:$0xff]
        %v263 = vld [vmem:[#allocation5 + $0xc0] sm:$0xff]
        %v264 = vld [vmem:[#allocation5 + $0xc8] sm:$0xff]
        %v265 = vld [vmem:[#allocation5 + $0xd0] sm:$0xff]
        %v266 = vld [vmem:[#allocation5 + $0xd8] sm:$0xff]
        %v267 = vld [vmem:[#allocation5 + $0xe0] sm:$0xff]
        %v268 = vld [vmem:[#allocation5 + $0xe8] sm:$0xff]
        %v269 = vld [vmem:[#allocation5 + $0xf0] sm:$0xff]
        %v270 = vld [vmem:[#allocation5 + $0xf8] sm:$0xff]
        %v271 = vld [vmem:[#allocation5 + $0x100] sm:$0xff]
        %v272 = vld [vmem:[#allocation5 + $0x108] sm:$0xff]
        %v273 = vld [vmem:[#allocation5 + $0x110] sm:$0xff]
        %v274 = vld [vmem:[#allocation5 + $0x118] sm:$0xff]
        %v275 = vld [vmem:[#allocation5 + $0x120] sm:$0xff]
        %v276 = vld [vmem:[#allocation5 + $0x128] sm:$0xff]
        %v277 = vld [vmem:[#allocation5 + $0x130] sm:$0xff]
        %v278 = vld [vmem:[#allocation5 + $0x138] sm:$0xff]
        %v279 = vld [vmem:[#allocation5 + $0x140] sm:$0xff]
        %v280 = vld [vmem:[#allocation5 + $0x148] sm:$0xff]
        %v281 = vld [vmem:[#allocation5 + $0x150] sm:$0xff]
        %v282 = vld [vmem:[#allocation5 + $0x158] sm:$0xff]
        %v283 = vld [vmem:[#allocation5 + $0x160] sm:$0xff]
        %v284 = vld [vmem:[#allocation5 + $0x168] sm:$0xff]
        %v285 = vld [vmem:[#allocation5 + $0x170] sm:$0xff]
        %v286 = vld [vmem:[#allocation5 + $0x178] sm:$0xff]
        %v287 = vld [vmem:[#allocation5 + $0x180] sm:$0xff]
        %v288 = vld [vmem:[#allocation5 + $0x188] sm:$0xff]
        %v289 = vld [vmem:[#allocation5 + $0x190] sm:$0xff]
        %v290 = vld [vmem:[#allocation5 + $0x198] sm:$0xff]
        %v291 = vld [vmem:[#allocation5 + $0x1a0] sm:$0xff]
        %v292 = vld [vmem:[#allocation5 + $0x1a8] sm:$0xff]
        %v293 = vld [vmem:[#allocation5 + $0x1b0] sm:$0xff]
        %v294 = vld [vmem:[#allocation5 + $0x1b8] sm:$0xff]
        %v295 = vld [vmem:[#allocation5 + $0x1c0] sm:$0xff]
        %v296 = vld [vmem:[#allocation5 + $0x1c8] sm:$0xff]
        %v297 = vld [vmem:[#allocation5 + $0x1d0] sm:$0xff]
        %v298 = vld [vmem:[#allocation5 + $0x1d8] sm:$0xff]
        %v299 = vld [vmem:[#allocation5 + $0x1e0] sm:$0xff]
        %v300 = vld [vmem:[#allocation5 + $0x1e8] sm:$0xff]
        %v301 = vld [vmem:[#allocation5 + $0x1f0] sm:$0xff]
        %v302 = vld [vmem:[#allocation5 + $0x1f8] sm:$0xff]
        %v303 = vld [vmem:[#allocation5 + $0x200] sm:$0xff]
        %v304 = vld [vmem:[#allocation5 + $0x208] sm:$0xff]
        %v305 = vld [vmem:[#allocation5 + $0x210] sm:$0xff]
        %v306 = vld [vmem:[#allocation5 + $0x218] sm:$0xff]
        %v307 = vld [vmem:[#allocation5 + $0x220] sm:$0xff]
        %v308 = vld [vmem:[#allocation5 + $0x228] sm:$0xff]
        %v309 = vld [vmem:[#allocation5 + $0x230] sm:$0xff]
        %v310 = vld [vmem:[#allocation5 + $0x238] sm:$0xff]
        %v311 = vld [vmem:[#allocation5 + $0x240] sm:$0xff]
        %v312 = vld [vmem:[#allocation5 + $0x248] sm:$0xff]
        %v313 = vld [vmem:[#allocation5 + $0x250] sm:$0xff]
        %v314 = vld [vmem:[#allocation5 + $0x258] sm:$0xff]
        %v315 = vld [vmem:[#allocation5 + $0x260] sm:$0xff]
        %v316 = vld [vmem:[#allocation5 + $0x268] sm:$0xff]
        %v317 = vld [vmem:[#allocation5 + $0x270] sm:$0xff]
        %v318 = vld [vmem:[#allocation5 + $0x278] sm:$0xff]
        %v319 = vld [vmem:[#allocation5 + $0x280] sm:$0xff]
        %v320 = vld [vmem:[#allocation5 + $0x288] sm:$0xff]
        %v321 = vld [vmem:[#allocation5 + $0x290] sm:$0xff]
        %v322 = vld [vmem:[#allocation5 + $0x298] sm:$0xff]
        %v323 = vld [vmem:[#allocation5 + $0x2a0] sm:$0xff]
        %v324 = vld [vmem:[#allocation5 + $0x2a8] sm:$0xff]
        %v325 = vld [vmem:[#allocation5 + $0x2b0] sm:$0xff]
        %v326 = vld [vmem:[#allocation5 + $0x2b8] sm:$0xff]
        %v327 = vld [vmem:[#allocation5 + $0x2c0] sm:$0xff]
        %v328 = vld [vmem:[#allocation5 + $0x2c8] sm:$0xff]
        %v329 = vld [vmem:[#allocation5 + $0x2d0] sm:$0xff]
        %v330 = vld [vmem:[#allocation5 + $0x2d8] sm:$0xff]
        %v331 = vld [vmem:[#allocation5 + $0x2e0] sm:$0xff]
        %v332 = vld [vmem:[#allocation5 + $0x2e8] sm:$0xff]
        %v333 = vld [vmem:[#allocation5 + $0x2f0] sm:$0xff]
        %v334 = vld [vmem:[#allocation5 + $0x2f8] sm:$0xff]
        %v335 = vld [vmem:[#allocation5 + $0x300] sm:$0xff]
        %v336 = vld [vmem:[#allocation5 + $0x308] sm:$0xff]
        %v337 = vld [vmem:[%s2] sm:$0x1]
        %v339 = vperm.slane %v337, 0
        %vm341 = vcmask 130048
        %v343 = vsel %vm341, %v217, 0
        %v346 = vsel %vm341, %v224, 0
        %v349 = vsel %vm341, %v231, 0
        %v352 = vsel %vm341, %v238, 0
        %354 = vmatpush.msra.mxu0 %v254
        %355 = vmatpush.msra.mxu0 %v253
        %356 = vmatpush.msra.mxu0 %v252
        %357 = vmatpush.msra.mxu0 %v251
        %358 = vmatpush.msra.mxu0 %v250
        %359 = vmatpush.msra.mxu0 %v249
        %360 = vmatpush.msra.mxu0 %v248
        %361 = vmatpush.msra.mxu0 %v247
        %362 = vmatpush.msra.mxu0 %v246
        %363 = vmatpush.msra.mxu0 %v245
        %364 = vmatpush.msra.mxu0 %v244
        %365 = vmatpush.msra.mxu0 %v243
        %366 = vmatpush.msra.mxu0 %v242
        %367 = vmatpush.msra.mxu0 %v241
        %368 = vmatpush.msra.mxu0 %v240
        %369 = vmatpush.msra.mxu0 %v239
        %370 = vmatmul.f32.gmra.mxu0 %v211
        %v371 = vpop.f32.mrf.mxu0
        %v372 = vadd.f32 %v339, %v371
        %373 = vmatmul.f32.gmra.mxu0 %v218
        %v374 = vpop.f32.mrf.mxu0
        %v375 = vadd.f32 %v339, %v374
        %376 = vmatmul.f32.gmra.mxu0 %v225
        %v377 = vpop.f32.mrf.mxu0
        %v378 = vadd.f32 %v339, %v377
        %379 = vmatmul.f32.gmra.mxu0 %v232
        %v380 = vpop.f32.mrf.mxu0
        %v381 = vadd.f32 %v339, %v380
        %382 = vdwg.mxu0
        %383 = vmatpush.msra.mxu0 %v270
        %384 = vmatpush.msra.mxu0 %v269
        %385 = vmatpush.msra.mxu0 %v268
        %386 = vmatpush.msra.mxu0 %v267
        %387 = vmatpush.msra.mxu0 %v266
        %388 = vmatpush.msra.mxu0 %v265
        %389 = vmatpush.msra.mxu0 %v264
        %390 = vmatpush.msra.mxu0 %v263
        %391 = vmatpush.msra.mxu0 %v262
        %392 = vmatpush.msra.mxu0 %v261
        %393 = vmatpush.msra.mxu0 %v260
        %394 = vmatpush.msra.mxu0 %v259
        %395 = vmatpush.msra.mxu0 %v258
        %396 = vmatpush.msra.mxu0 %v257
        %397 = vmatpush.msra.mxu0 %v256
        %398 = vmatpush.msra.mxu0 %v255
        %399 = vmatmul.f32.gmra.mxu0 %v212
        %v400 = vpop.f32.mrf.mxu0
        %v401 = vadd.f32 %v372, %v400
        %402 = vmatmul.f32.gmra.mxu0 %v219
        %v403 = vpop.f32.mrf.mxu0
        %v404 = vadd.f32 %v375, %v403
        %405 = vmatmul.f32.gmra.mxu0 %v226
        %v406 = vpop.f32.mrf.mxu0
        %v407 = vadd.f32 %v378, %v406
        %408 = vmatmul.f32.gmra.mxu0 %v233
        %v409 = vpop.f32.mrf.mxu0
        %v410 = vadd.f32 %v381, %v409
        %411 = vdwg.mxu0
        %412 = vmatpush.msra.mxu0 %v286
        %413 = vmatpush.msra.mxu0 %v285
        %414 = vmatpush.msra.mxu0 %v284
        %415 = vmatpush.msra.mxu0 %v283
        %416 = vmatpush.msra.mxu0 %v282
        %417 = vmatpush.msra.mxu0 %v281
        %418 = vmatpush.msra.mxu0 %v280
        %419 = vmatpush.msra.mxu0 %v279
        %420 = vmatpush.msra.mxu0 %v278
        %421 = vmatpush.msra.mxu0 %v277
        %422 = vmatpush.msra.mxu0 %v276
        %423 = vmatpush.msra.mxu0 %v275
        %424 = vmatpush.msra.mxu0 %v274
        %425 = vmatpush.msra.mxu0 %v273
        %426 = vmatpush.msra.mxu0 %v272
        %427 = vmatpush.msra.mxu0 %v271
        %428 = vmatmul.f32.gmra.mxu0 %v213
        %v429 = vpop.f32.mrf.mxu0
        %v430 = vadd.f32 %v401, %v429
        %431 = vmatmul.f32.gmra.mxu0 %v220
        %v432 = vpop.f32.mrf.mxu0
        %v433 = vadd.f32 %v404, %v432
        %434 = vmatmul.f32.gmra.mxu0 %v227
        %v435 = vpop.f32.mrf.mxu0
        %v436 = vadd.f32 %v407, %v435
        %437 = vmatmul.f32.gmra.mxu0 %v234
        %v438 = vpop.f32.mrf.mxu0
        %v439 = vadd.f32 %v410, %v438
        %440 = vdwg.mxu0
        %441 = vmatpush.msra.mxu0 %v302
        %442 = vmatpush.msra.mxu0 %v301
        %443 = vmatpush.msra.mxu0 %v300
        %444 = vmatpush.msra.mxu0 %v299
        %445 = vmatpush.msra.mxu0 %v298
        %446 = vmatpush.msra.mxu0 %v297
        %447 = vmatpush.msra.mxu0 %v296
        %448 = vmatpush.msra.mxu0 %v295
        %449 = vmatpush.msra.mxu0 %v294
        %450 = vmatpush.msra.mxu0 %v293
        %451 = vmatpush.msra.mxu0 %v292
        %452 = vmatpush.msra.mxu0 %v291
        %453 = vmatpush.msra.mxu0 %v290
        %454 = vmatpush.msra.mxu0 %v289
        %455 = vmatpush.msra.mxu0 %v288
        %456 = vmatpush.msra.mxu0 %v287
        %457 = vmatmul.f32.gmra.mxu0 %v214
        %v458 = vpop.f32.mrf.mxu0
        %v459 = vadd.f32 %v430, %v458
        %460 = vmatmul.f32.gmra.mxu0 %v221
        %v461 = vpop.f32.mrf.mxu0
        %v462 = vadd.f32 %v433, %v461
        %463 = vmatmul.f32.gmra.mxu0 %v228
        %v464 = vpop.f32.mrf.mxu0
        %v465 = vadd.f32 %v436, %v464
        %466 = vmatmul.f32.gmra.mxu0 %v235
        %v467 = vpop.f32.mrf.mxu0
        %v468 = vadd.f32 %v439, %v467
        %469 = vdwg.mxu0
        %470 = vmatpush.msra.mxu0 %v318
        %471 = vmatpush.msra.mxu0 %v317
        %472 = vmatpush.msra.mxu0 %v316
        %473 = vmatpush.msra.mxu0 %v315
        %474 = vmatpush.msra.mxu0 %v314
        %475 = vmatpush.msra.mxu0 %v313
        %476 = vmatpush.msra.mxu0 %v312
        %477 = vmatpush.msra.mxu0 %v311
        %478 = vmatpush.msra.mxu0 %v310
        %479 = vmatpush.msra.mxu0 %v309
        %480 = vmatpush.msra.mxu0 %v308
        %481 = vmatpush.msra.mxu0 %v307
        %482 = vmatpush.msra.mxu0 %v306
        %483 = vmatpush.msra.mxu0 %v305
        %484 = vmatpush.msra.mxu0 %v304
        %485 = vmatpush.msra.mxu0 %v303
        %486 = vmatmul.f32.gmra.mxu0 %v215
        %v487 = vpop.f32.mrf.mxu0
        %v488 = vadd.f32 %v459, %v487
        %489 = vmatmul.f32.gmra.mxu0 %v222
        %v490 = vpop.f32.mrf.mxu0
        %v491 = vadd.f32 %v462, %v490
        %492 = vmatmul.f32.gmra.mxu0 %v229
        %v493 = vpop.f32.mrf.mxu0
        %v494 = vadd.f32 %v465, %v493
        %495 = vmatmul.f32.gmra.mxu0 %v236
        %v496 = vpop.f32.mrf.mxu0
        %v497 = vadd.f32 %v468, %v496
        %498 = vdwg.mxu0
        %499 = vmatpush.msra.mxu0 %v334
        %500 = vmatpush.msra.mxu0 %v333
        %501 = vmatpush.msra.mxu0 %v332
        %502 = vmatpush.msra.mxu0 %v331
        %503 = vmatpush.msra.mxu0 %v330
        %504 = vmatpush.msra.mxu0 %v329
        %505 = vmatpush.msra.mxu0 %v328
        %506 = vmatpush.msra.mxu0 %v327
        %507 = vmatpush.msra.mxu0 %v326
        %508 = vmatpush.msra.mxu0 %v325
        %509 = vmatpush.msra.mxu0 %v324
        %510 = vmatpush.msra.mxu0 %v323
        %511 = vmatpush.msra.mxu0 %v322
        %512 = vmatpush.msra.mxu0 %v321
        %513 = vmatpush.msra.mxu0 %v320
        %514 = vmatpush.msra.mxu0 %v319
        %515 = vmatmul.f32.gmra.mxu0 %v216
        %v516 = vpop.f32.mrf.mxu0
        %v517 = vadd.f32 %v488, %v516
        %518 = vmatmul.f32.gmra.mxu0 %v223
        %v519 = vpop.f32.mrf.mxu0
        %v520 = vadd.f32 %v491, %v519
        %521 = vmatmul.f32.gmra.mxu0 %v230
        %v522 = vpop.f32.mrf.mxu0
        %v523 = vadd.f32 %v494, %v522
        %524 = vmatmul.f32.gmra.mxu0 %v237
        %v525 = vpop.f32.mrf.mxu0
        %v526 = vadd.f32 %v497, %v525
        %527 = vdwg.mxu0
        %528 = vmatpush.msra.mxu0 0.0
        %529 = vmatpush.msra.mxu0 0.0
        %530 = vmatpush.msra.mxu0 0.0
        %531 = vmatpush.msra.mxu0 0.0
        %532 = vmatpush.msra.mxu0 0.0
        %533 = vmatpush.msra.mxu0 0.0
        %534 = vmatpush.msra.mxu0 0.0
        %535 = vmatpush.msra.mxu0 0.0
        %536 = vmatpush.msra.mxu0 0.0
        %537 = vmatpush.msra.mxu0 0.0
        %538 = vmatpush.msra.mxu0 0.0
        %539 = vmatpush.msra.mxu0 0.0
        %540 = vmatpush.msra.mxu0 0.0
        %541 = vmatpush.msra.mxu0 0.0
        %542 = vmatpush.msra.mxu0 %v336
        %543 = vmatpush.msra.mxu0 %v335
        %544 = vmatmul.f32.gmra.mxu0 %v343
        %v545 = vpop.f32.mrf.mxu0
        %v546 = vadd.f32 %v517, %v545
        %547 = vmatmul.f32.gmra.mxu0 %v346
        %v548 = vpop.f32.mrf.mxu0
        %v549 = vadd.f32 %v520, %v548
        %550 = vmatmul.f32.gmra.mxu0 %v349
        %v551 = vpop.f32.mrf.mxu0
        %v552 = vadd.f32 %v523, %v551
        %553 = vmatmul.f32.gmra.mxu0 %v352
        %v554 = vpop.f32.mrf.mxu0
        %v555 = vadd.f32 %v526, %v554
        %556 = vdwg.mxu0
        %557 = vst [vmem:[%s208] sm:$0xff] %v546
        %558 = vst [vmem:[%s208 + $0x8] sm:$0xff] %v549
        %559 = vst [vmem:[%s208 + $0x10] sm:$0xff] %v552
        %560 = vst [vmem:[%s208 + $0x18] sm:$0xff] %v555
        %s561 = sand.u32 %s97, 1
        %s562 = scalar_lea.sflag [#allocation4], %s561
        %s563 = sand.u32 %s97, 1
        %s564 = smul.addr %s563, 32
        %s565 = scalar_lea.vmem [#allocation7], %s564
        // Predicated region
        $region41: #{tpu_custom_call.1} parent=31 // pred_check
          %p566 = pneg %p107
        $region42: #{tpu_custom_call.1} parent=31 // pred_check_branch
          %568 = sbr.rel (%p566) target = $region44
        $region43: #{tpu_custom_call.1} parent=31 // pred_region
          %s569 = smul.u32 4, %s21
          %571 = vsyncadd %s562, 0
          %s572 = smul.addr %s569, 8
          %s573 = scalar_lea.hbm %s3, %s572
          %s574 = sshll.u32 %s565, 4
          %s575 = int_to_ptr.vmem [resolvable:$true] %s574
          %s576 = sshll.u32 %s573, 4
          %s577 = int_to_ptr.hbm [resolvable:$true] %s576
          %582 = dma.vmem_to_hbm [thread:$0]  %s575, 512, %s577, %s562, 128, 128, 8
        $region44: #{tpu_custom_call.1} parent=31 // pred_fallthru
          _
      $region32: #{tpu_custom_call.1} parent=5 // pred_fallthru
        _
      %p583 = scmp.le.s32.totalorder 2, %s16
      // Predicated region
      $region45: #{tpu_custom_call.1} parent=5 // pred_check
        %p584 = pneg %p583
      $region46: #{tpu_custom_call.1} parent=5 // pred_check_branch
        %586 = sbr.rel (%p584) target = $region48
      $region47: #{tpu_custom_call.1} parent=5 // pred_region
        %s587 = ssub.s32 %s16, 2
        // Predicated region
        $region49: #{tpu_custom_call.1} parent=47 // pred_check
          %p588 = pneg %p113
        $region50: #{tpu_custom_call.1} parent=47 // pred_check_branch
          %590 = sbr.rel (%p588) target = $region52
        $region51: #{tpu_custom_call.1} parent=47 // pred_region
          %s591 = sand.u32 %s98, 1
          %s592 = scalar_lea.sflag [#allocation4], %s591
          %s593 = sand.u32 %s98, 1
          %s594 = smul.addr %s593, 32
          %s595 = scalar_lea.vmem [#allocation7], %s594
          %597 = dma.done %s592, 512
        $region52: #{tpu_custom_call.1} parent=47 // pred_fallthru
          _
      $region48: #{tpu_custom_call.1} parent=5 // pred_fallthru
        _
    $region6: #{tpu_custom_call.1} parent=1 // loop_footer
      %s20 = sadd.s32 1, %s16
    $region7: #{tpu_custom_call.1} parent=1 // loop_footer_branch
      %15 = sbr.rel target = $region3
    $region8: #{tpu_custom_call.1} parent=1 // loop_exit
      _
    %598 = vsyncpa [#allocation3], 1
    %s599 = scalar_lea.sflag [#allocation3], 1
    %600 = vsyncpa %s599, 1
    %601 = vsyncpa [#allocation6], 1
    %602 = vsyncpa [#allocation4], 1
    %s603 = scalar_lea.sflag [#allocation4], 1
    %604 = vsyncpa %s603, 1

</llo_original>
